<compile_context>
chip_gen: v6e
topology: v6e:2x2x1
jax: 0.10.0
libtpu: 0.0.40
codegen_flags: <defaults>
</compile_context>

<pallas_src>
import functools

import jax
import jax.numpy as jnp
from jax.experimental import pallas as pl
from jax.experimental.pallas import tpu as pltpu

EPS = 1e-5                      # PyTorch InstanceNorm1d default eps
LANES = 128                     # TPU lane width: channel dims are padded to this
_BIG = 3.0e38                   # "+inf" stand-in for distance masking


def _round_up(x, m):
    return (x + m - 1) // m * m


# ----------------------------------------------------------------- sizing ---

_VMEM_LIMIT_CACHE = None


def _vmem_limit_bytes():
    """Generation-aware scoped-VMEM request: ~96 MiB on 128-MiB parts (v5e/v6e),
    ~48 MiB on 64-MiB parts (v7x)."""
    global _VMEM_LIMIT_CACHE
    if _VMEM_LIMIT_CACHE is None:
        try:
            cap = int(getattr(pltpu.get_tpu_info(), "vmem_capacity_bytes",
                              64 * 1024 * 1024))
        except Exception:
            cap = 64 * 1024 * 1024
        _VMEM_LIMIT_CACHE = max(32 * 1024 * 1024,
                                min(cap * 3 // 4, 100 * 1024 * 1024))
    return _VMEM_LIMIT_CACHE


def _pick_tile(n, preferred, multiple):
    best = None
    t = multiple
    while t <= n:
        if n % t == 0 and t <= preferred:
            best = t
        t += multiple
    return n if best is None else best


def _default_tile_n(n, vmem_limit):
    preferred = 512 if vmem_limit >= 72 * 1024 * 1024 else 256
    return _pick_tile(n, preferred, 8)


def _default_knn_col_tile(n, preferred=512):
    if n <= preferred or n % 128 != 0:
        return n
    t = (preferred // 128) * 128
    while t >= 128:
        if n % t == 0:
            return t
        t -= 128
    return n


# ---------------------------------------------------------------- kernels ---

def _knn_kernel(prow_ref, pcol_ref, idx_ref, bd_ref, bi_ref, *, K):
    """Chunked K-nearest-neighbour search for one (batch, row-tile, col-chunk).

    prow_ref: (1, TR, 3)  row-tile query points
    pcol_ref: (1, 3, TC)  column-chunk support points
    idx_ref : (1, TR, K)  int32 neighbour indices (self first, then ascending)
    bd_ref / bi_ref: (TR, K-1) running K-1 best distances / indices (scratch,
                     accumulated across the 'arbitrary' column-chunk grid axis).
    """
    r = pl.program_id(1)
    c = pl.program_id(2)
    nc = pl.num_programs(2)

    pr = prow_ref[0]                                   # (TR, 3)
    pc = pcol_ref[0]                                   # (3, TC)
    TR = pr.shape[0]
    TC = pc.shape[1]

    row_g = r * TR + jax.lax.broadcasted_iota(jnp.int32, (TR, 1), 0)
    col_g = c * TC + jax.lax.broadcasted_iota(jnp.int32, (1, TC), 1)

    # Squared distances for this chunk: 3 broadcast-subtract-square VPU passes,
    # only a (TR, TC) slab is ever live (never the full (TR, N) matrix).
    d = jnp.zeros((TR, TC), jnp.float32)
    for ax in range(3):
        diff = pr[:, ax:ax + 1] - pc[ax:ax + 1, :]
        d = d + diff * diff
    # Slot 0 of the output is always the query point itself (distance 0), so it
    # is excluded here and only K-1 neighbours are searched for.
    d = jnp.where(col_g == row_g, _BIG, d)

    @pl.when(c == 0)
    def _():
        bd_ref[...] = jnp.full((TR, K - 1), _BIG, jnp.float32)
        bi_ref[...] = jnp.zeros((TR, K - 1), jnp.int32)

    carried_d = bd_ref[...]
    carried_i = bi_ref[...]
    cand_d = jnp.concatenate([carried_d, d], axis=1)                 # (TR, K-1+TC)
    cand_i = jnp.concatenate(
        [carried_i.astype(jnp.float32),
         jnp.broadcast_to(col_g.astype(jnp.float32), (TR, TC))], axis=1)

    # Running K-best merge by iterative argmin extraction (indices carried as
    # f32; exact for N < 2^24, ties broken by lowest index).
    new_d = carried_d
    new_i = carried_i
    slot = jax.lax.broadcasted_iota(jnp.int32, (TR, K - 1), 1)
    for j in range(K - 1):
        m = jnp.min(cand_d, axis=1, keepdims=True)                   # (TR, 1)
        scored = jnp.where(cand_d <= m, cand_i, _BIG)
        sel = jnp.min(scored, axis=1, keepdims=True)
        new_d = jnp.where(slot == j, m, new_d)
        new_i = jnp.where(slot == j, sel.astype(jnp.int32), new_i)
        cand_d = jnp.where(scored == sel, _BIG, cand_d)              # reuse mask
    bd_ref[...] = new_d
    bi_ref[...] = new_i

    @pl.when(c == nc - 1)
    def _():
        idx_ref[0] = jnp.concatenate([row_g, new_i], axis=1)         # (TR, K)


def _gather_conv_kernel(x_ref, idx_ref, w_ref, b_ref, y_ref, s_ref, q_ref,
                        *, K, use_take):
    """Fused neighbour gather + deep conv matmul + bias + partial norm stats.

    x_ref  : (1, N, Cin)         bf16 per-batch slab, VMEM-resident (Buffered(1))
    idx_ref: (1, T, K) int32     neighbour indices for this tile
    w_ref  : (K*Cin, Cout) bf16  all K per-slot weights flattened (deep matmul)
    b_ref  : (1, Cout) f32
    y_ref  : (1, T, Cout) f32    pre-norm conv output tile
    s_ref/q_ref: (1,1,1,Cout)    per-(batch, split) sum / sum-of-squares,
                                 accumulated across the 'arbitrary' tile axis.
    """
    t = pl.program_id(2)
    x = x_ref[0]                                       # (N, Cin) bf16
    idx = idx_ref[0]                                   # (T, K) int32

    parts = []
    if use_take:
        # Real row gather on the VMEM-resident slab: O(T*K) rows, no O(N^2)
        # one-hot flops.
        for k in range(K):
            parts.append(jnp.take_along_axis(x, idx[:, k:k + 1], axis=0))
    else:
        # Fallback: exact one-hot MXU gather.  The iota is only (1, N); the
        # per-k (T, N) compare is unavoidable in this formulation.
        col = jax.lax.broadcasted_iota(jnp.int32, (1, x.shape[0]), 1)
        for k in range(K):
            onehot = (col == idx[:, k:k + 1]).astype(jnp.bfloat16)   # (T, N)
            parts.append(jnp.dot(onehot, x, preferred_element_type=jnp.float32
                                 ).astype(jnp.bfloat16))             # (T, Cin)
    xg = jnp.concatenate(parts, axis=1)                              # (T, K*Cin)

    # Single deep contraction for all K neighbour slots.
    y = jnp.dot(xg, w_ref[...], preferred_element_type=jnp.float32) + b_ref[...]
    y_ref[0] = y

    @pl.when(t == 0)
    def _():
        s_ref[...] = jnp.zeros_like(s_ref)
        q_ref[...] = jnp.zeros_like(q_ref)

    # TODO(synk): E[x^2]-E[x]^2 accumulation in f32 can lose precision when
    # |mean| >> std (consider a Welford-style combine).
    s_ref[...] += jnp.sum(y, axis=0, keepdims=True)
    q_ref[...] += jnp.sum(y * y, axis=0, keepdims=True)


def _dense_conv_kernel(x_ref, w_ref, b_ref, y_ref, s_ref, q_ref):
    """1x1 conv (dense matmul) + bias + partial InstanceNorm stats (proj path)."""
    t = pl.program_id(2)
    x = x_ref[0]                                                     # (T, Cin) bf16
    y = jnp.dot(x, w_ref[...], preferred_element_type=jnp.float32) + b_ref[...]
    y_ref[0] = y

    @pl.when(t == 0)
    def _():
        s_ref[...] = jnp.zeros_like(s_ref)
        q_ref[...] = jnp.zeros_like(q_ref)

    s_ref[...] += jnp.sum(y, axis=0, keepdims=True)
    q_ref[...] += jnp.sum(y * y, axis=0, keepdims=True)


def _norm_res_act_kernel(*refs, n_points, has_residual, apply_act):
    """InstanceNorm1d(affine) + optional residual add + optional ReLU.

    Per-(batch, split) partial stats from the conv pass are combined here, so
    the per-tile normalisation is exact over the full point axis.  Stats and
    normalisation math are f32; the output (inter-stage tensor) is bf16.
    """
    if has_residual:
        y_ref, s_ref, q_ref, g_ref, be_ref, r_ref, o_ref = refs
    else:
        y_ref, s_ref, q_ref, g_ref, be_ref, o_ref = refs
        r_ref = None
    inv_n = jnp.float32(1.0 / n_points)
    s = jnp.sum(s_ref[0], axis=0)                                    # (1, C)
    q = jnp.sum(q_ref[0], axis=0)                                    # (1, C)
    mean = s * inv_n
    var = jnp.maximum(q * inv_n - mean * mean, 0.0)                  # biased
    y = (y_ref[0] - mean) * jax.lax.rsqrt(var + EPS)                 # (T, C)
    y = y * g_ref[...] + be_ref[...]
    if has_residual:
        y = y + r_ref[0].astype(jnp.float32)
    if apply_act:
        y = jnp.maximum(y, 0.0)                                      # ReLU
    o_ref[0] = y.astype(o_ref.dtype)


# --------------------------------------------------------------- wrappers ---

def knn_indices(points_bn3, points_b3n, K, tile_r, tile_c, vmem_limit):
    B, N, _ = points_bn3.shape
    return pl.pallas_call(
        functools.partial(_knn_kernel, K=K),
        out_shape=jax.ShapeDtypeStruct((B, N, K), jnp.int32),
        grid=(B, N // tile_r, N // tile_c),
        in_specs=[pl.BlockSpec((1, tile_r, 3), lambda b, r, c: (b, r, 0)),
                  pl.BlockSpec((1, 3, tile_c), lambda b, r, c: (b, 0, c))],
        out_specs=pl.BlockSpec((1, tile_r, K), lambda b, r, c: (b, r, 0)),
        scratch_shapes=[pltpu.VMEM((tile_r, K - 1), jnp.float32),
                        pltpu.VMEM((tile_r, K - 1), jnp.int32)],
        compiler_params=pltpu.CompilerParams(
            dimension_semantics=("parallel", "parallel", "arbitrary"),
            vmem_limit_bytes=vmem_limit),
    )(points_bn3, points_b3n)


def _gather_conv_reference(x, idx, w2, b):
    """Pure-JAX f32 reference of the fused gather + deep matmul (validation)."""
    xf = x.astype(jnp.float32)
    g = jax.vmap(lambda f, i: f[i])(xf, idx)                         # (B,N,K,C)
    g = g.reshape(xf.shape[0], xf.shape[1], -1)                      # (B,N,K*C)
    return g @ w2.astype(jnp.float32) + b


def _build_gather_conv(B, N, cin_p, K, cout_p, tile_n, n_split, vmem_limit,
                       mode, single_buffer_slab):
    tps = N // (tile_n * n_split)

    slab_kwargs = {}
    if single_buffer_slab:
        # Slab only changes at batch boundaries; single-buffer it so the VMEM
        # footprint is 1x (not 2x) the per-batch slab.
        slab_kwargs["pipeline_mode"] = pl.Buffered(1)
    x_spec = pl.BlockSpec((1, N, cin_p), lambda b, h, t: (b, 0, 0), **slab_kwargs)

    flops = 2 * B * N * K * cin_p * cout_p
    if mode == "onehot":
        flops += 2 * B * N * N * K * cin_p
    bytes_accessed = (2 * B * n_split * N * cin_p + 4 * B * N * K
                      + 2 * K * cin_p * cout_p + 4 * B * N * cout_p
                      + 8 * B * n_split * cout_p + 4 * cout_p)

    return pl.pallas_call(
        functools.partial(_gather_conv_kernel, K=K, use_take=(mode == "take")),
        out_shape=(jax.ShapeDtypeStruct((B, N, cout_p), jnp.float32),
                   jax.ShapeDtypeStruct((B, n_split, 1, cout_p), jnp.float32),
                   jax.ShapeDtypeStruct((B, n_split, 1, cout_p), jnp.float32)),
        grid=(B, n_split, tps),
        in_specs=[x_spec,
                  pl.BlockSpec((1, tile_n, K),
                               lambda b, h, t: (b, h * tps + t, 0)),
                  pl.BlockSpec((K * cin_p, cout_p), lambda b, h, t: (0, 0)),
                  pl.BlockSpec((1, cout_p), lambda b, h, t: (0, 0))],
        out_specs=(pl.BlockSpec((1, tile_n, cout_p),
                                lambda b, h, t: (b, h * tps + t, 0)),
                   pl.BlockSpec((1, 1, 1, cout_p), lambda b, h, t: (b, h, 0, 0)),
                   pl.BlockSpec((1, 1, 1, cout_p), lambda b, h, t: (b, h, 0, 0))),
        compiler_params=pltpu.CompilerParams(
            dimension_semantics=("parallel", "parallel", "arbitrary"),
            vmem_limit_bytes=vmem_limit),
        cost_estimate=pl.CostEstimate(flops=int(flops), transcendentals=0,
                                      bytes_accessed=int(bytes_accessed)),
    )


_GATHER_IMPL = {}   # (shape signature) -> (mode, single_buffer_slab)


def gather_conv(x, idx, w2, b, *, tile_n, n_split, vmem_limit):
    """x: (B,N,Cin) bf16, idx: (B,N,K) i32, w2: (K*Cin,Cout) bf16, b: (1,Cout)."""
    B, N, cin_p = x.shape
    K = idx.shape[2]
    cout_p = w2.shape[1]
    assert w2.shape[0] == K * cin_p
    key = (B, N, cin_p, K, cout_p, tile_n, n_split)

    if key in _GATHER_IMPL:
        configs = [_GATHER_IMPL[key]]
    else:
        # Prefer the real row gather; fall back to the exact one-hot MXU gather
        # if the gather / Buffered(1) pattern does not lower on this Mosaic.
        configs = [("take", True), ("take", False),
                   ("onehot", True), ("onehot", False)]

    last_err = None
    for mode, single_buf in configs:
        try:
            fn = _build_gather_conv(B, N, cin_p, K, cout_p, tile_n, n_split,
                                    vmem_limit, mode, single_buf)
            y, s, q = fn(x, idx, w2, b)
            jax.block_until_ready(y)
            if key not in _GATHER_IMPL:       # validate the impl once per shape
                y_ref = _gather_conv_reference(x, idx, w2, b)
                if not bool(jnp.allclose(y, y_ref, atol=1e-2, rtol=1e-2)):
                    raise FloatingPointError(
                        "gather_conv validation failed for mode=%r" % (mode,))
            _GATHER_IMPL[key] = (mode, single_buf)
            return y, s, q
        except Exception as e:                # unsupported lowering -> next config
            last_err = e
    raise last_err


def dense_conv(x, w, b, *, tile_n, n_split, vmem_limit):
    """x: (B,N,Cin) bf16, w: (Cin,Cout) bf16, b: (1,Cout) f32."""
    B, N, cin = x.shape
    cout_p = w.shape[1]
    assert w.shape[0] == cin
    tps = N // (tile_n * n_split)
    return pl.pallas_call(
        _dense_conv_kernel,
        out_shape=(jax.ShapeDtypeStruct((B, N, cout_p), jnp.float32),
                   jax.ShapeDtypeStruct((B, n_split, 1, cout_p), jnp.float32),
                   jax.ShapeDtypeStruct((B, n_split, 1, cout_p), jnp.float32)),
        grid=(B, n_split, tps),
        in_specs=[pl.BlockSpec((1, tile_n, cin),
                               lambda b, h, t: (b, h * tps + t, 0)),
                  pl.BlockSpec((cin, cout_p), lambda b, h, t: (0, 0)),
                  pl.BlockSpec((1, cout_p), lambda b, h, t: (0, 0))],
        out_specs=(pl.BlockSpec((1, tile_n, cout_p),
                                lambda b, h, t: (b, h * tps + t, 0)),
                   pl.BlockSpec((1, 1, 1, cout_p), lambda b, h, t: (b, h, 0, 0)),
                   pl.BlockSpec((1, 1, 1, cout_p), lambda b, h, t: (b, h, 0, 0))),
        compiler_params=pltpu.CompilerParams(
            dimension_semantics=("parallel", "parallel", "arbitrary"),
            vmem_limit_bytes=vmem_limit),
    )(x, w, b)


def instnorm_res_act(y, s, q, gamma, beta, *, n_points, residual, apply_act,
                     tile_n, vmem_limit):
    B, N, C = y.shape
    S = s.shape[1]
    has_res = residual is not None
    kern = functools.partial(_norm_res_act_kernel, n_points=n_points,
                             has_residual=has_res, apply_act=apply_act)
    in_specs = [pl.BlockSpec((1, tile_n, C), lambda b, t: (b, t, 0)),
                pl.BlockSpec((1, S, 1, C), lambda b, t: (b, 0, 0, 0)),
                pl.BlockSpec((1, S, 1, C), lambda b, t: (b, 0, 0, 0)),
                pl.BlockSpec((1, C), lambda b, t: (0, 0)),
                pl.BlockSpec((1, C), lambda b, t: (0, 0))]
    args = [y, s, q, gamma, beta]
    if has_res:
        in_specs.append(pl.BlockSpec((1, tile_n, C), lambda b, t: (b, t, 0)))
        args.append(residual)
    return pl.pallas_call(
        kern,
        out_shape=jax.ShapeDtypeStruct((B, N, C), jnp.bfloat16),
        grid=(B, N // tile_n),
        in_specs=in_specs,
        out_specs=pl.BlockSpec((1, tile_n, C), lambda b, t: (b, t, 0)),
        compiler_params=pltpu.CompilerParams(
            dimension_semantics=("parallel", "parallel"),
            vmem_limit_bytes=vmem_limit),
    )(*args)


# ------------------------------------------------------------------ Block ---

def init_block_params(key, in_channels, out_channels, K):
    """Demo parameter init.  Channel dims are zero-padded to the 128-lane width
    so every kernel operand / store is lane-dense; padded channels provably stay
    zero through conv + InstanceNorm + residual + ReLU and are sliced off at the
    block output.  Conv weights are bf16 MXU operands; the K per-slot weights
    are stored pre-flattened as (K*C, C) for the deep matmul."""
    cout_p = _round_up(out_channels, LANES)
    keys = jax.random.split(key, 5)

    def nconv_w(k):
        scale = 1.0 / float(K * out_channels) ** 0.5
        w = jax.random.uniform(k, (K, out_channels, out_channels), jnp.float32,
                               -scale, scale)
        w = jnp.pad(w, ((0, 0), (0, cout_p - out_channels),
                        (0, cout_p - out_channels)))
        return w.reshape(K * cout_p, cout_p).astype(jnp.bfloat16)

    p = {"K": K, "in_channels": in_channels, "out_channels": out_channels,
         "cout_p": cout_p}
    if in_channels != out_channels:
        scale = 1.0 / float(in_channels) ** 0.5
        w = jax.random.uniform(keys[0], (in_channels, out_channels), jnp.float32,
                               -scale, scale)
        p["proj_w"] = jnp.pad(w, ((0, 0), (0, cout_p - out_channels))
                              ).astype(jnp.bfloat16)
        b = jax.random.uniform(keys[1], (1, out_channels), jnp.float32, -0.1, 0.1)
        p["proj_b"] = jnp.pad(b, ((0, 0), (0, cout_p - out_channels)))
        p["proj_gamma"] = jnp.ones((1, cout_p), jnp.float32)
        p["proj_beta"] = jnp.zeros((1, cout_p), jnp.float32)
    else:
        p["proj_w"] = None
    for name, wkey in (("enc1", keys[2]), ("enc2", keys[3])):
        p[name + "_w"] = nconv_w(wkey)
        p[name + "_b"] = jnp.zeros((1, cout_p), jnp.float32)
        p[name + "_gamma"] = jnp.ones((1, cout_p), jnp.float32)
        p[name + "_beta"] = jnp.zeros((1, cout_p), jnp.float32)
    return p


def block_forward(params, input_bcn, points_b3n, indices=None,
                  tile_n=None, knn_tile_r=None, knn_tile_c=None):
    """Mirrors Block.forward.  input: (B, Cin, N), points: (B, 3, N) [NCW]."""
    B, cin, N = input_bcn.shape
    K = params["K"]
    cout = params["out_channels"]
    cout_p = params["cout_p"]

    vmem_limit = _vmem_limit_bytes()
    if tile_n is None:
        tile_n = _default_tile_n(N, vmem_limit)
    assert N % 8 == 0 and tile_n % 8 == 0 and N % tile_n == 0, \
        "N must be a multiple of tile_n (both multiples of 8)"
    # TODO(synk): pad/mask the point axis (KNN distances + norm stats) so a
    # general N (not a multiple of the tile) is supported.
    assert 2 <= K <= N and N < (1 << 24)

    n_tiles = N // tile_n
    n_split = 2 if (n_tiles >= 2 and n_tiles % 2 == 0) else 1  # megacore (v7x)

    # Layout glue at the block boundary only; inside the block everything is
    # channels-last bf16.
    # TODO(synk): keep consecutive Blocks channels-last/bf16 end-to-end to drop
    # these per-block NCW<->NWC transposes entirely.
    x_nwc = jnp.transpose(input_bcn, (0, 2, 1))                       # (B,N,Cin)
    pts_rows = jnp.transpose(points_b3n, (0, 2, 1)).astype(jnp.float32)
    pts_cols = points_b3n.astype(jnp.float32)

    # Optional 1x1 conv + InstanceNorm (in_channels != out_channels path).
    if params["proj_w"] is not None:
        y, s, q = dense_conv(x_nwc.astype(jnp.bfloat16), params["proj_w"],
                             params["proj_b"], tile_n=tile_n, n_split=n_split,
                             vmem_limit=vmem_limit)
        x0 = instnorm_res_act(y, s, q, params["proj_gamma"], params["proj_beta"],
                              n_points=N, residual=None, apply_act=False,
                              tile_n=tile_n, vmem_limit=vmem_limit)
    else:
        x0 = jnp.pad(x_nwc, ((0, 0), (0, 0), (0, cout_p - cin))
                     ).astype(jnp.bfloat16)

    # Search(K, stride=1): KNN over points (support_points == points).
    if indices is None:
        tile_r = knn_tile_r if knn_tile_r is not None else _pick_tile(N, 256, 8)
        tile_c = knn_tile_c if knn_tile_c is not None else _default_knn_col_tile(N)
        assert N % tile_r == 0 and tile_r % 8 == 0
        assert N % tile_c == 0 and (tile_c == N or tile_c % 128 == 0)
        indices = knn_indices(pts_rows, pts_cols, K, tile_r, tile_c, vmem_limit)

    # enc1: neighbourhood conv -> InstanceNorm -> ReLU.
    y, s, q = gather_conv(x0, indices, params["enc1_w"], params["enc1_b"],
                          tile_n=tile_n, n_split=n_split, vmem_limit=vmem_limit)
    h = instnorm_res_act(y, s, q, params["enc1_gamma"], params["enc1_beta"],
                         n_points=N, residual=None, apply_act=True,
                         tile_n=tile_n, vmem_limit=vmem_limit)

    # enc2: neighbourhood conv -> InstanceNorm, then x = act(input + x) (fused).
    y, s, q = gather_conv(h, indices, params["enc2_w"], params["enc2_b"],
                          tile_n=tile_n, n_split=n_split, vmem_limit=vmem_limit)
    out = instnorm_res_act(y, s, q, params["enc2_gamma"], params["enc2_beta"],
                           n_points=N, residual=x0, apply_act=True,
                           tile_n=tile_n, vmem_limit=vmem_limit)

    out = jnp.transpose(out[..., :cout].astype(jnp.float32), (0, 2, 1))
    return out, points_b3n, indices


# -------------------------------------------------------------- reference ---

def _reference_block(params, input_bcn, idx):
    """Pure-JAX f32 reference of the same forward (uses the given KNN indices)."""
    cout = params["out_channels"]
    cout_p = params["cout_p"]
    x = jnp.transpose(input_bcn, (0, 2, 1)).astype(jnp.float32)
    cin = x.shape[2]

    def inorm(y, gamma, beta):
        mean = jnp.mean(y, axis=1, keepdims=True)
        var = jnp.mean((y - mean) ** 2, axis=1, keepdims=True)
        return (y - mean) * jax.lax.rsqrt(var + EPS) * gamma + beta

    if params["proj_w"] is not None:
        y = x @ params["proj_w"].astype(jnp.float32) + params["proj_b"]
        x0 = inorm(y, params["proj_gamma"], params["proj_beta"])
    else:
        x0 = jnp.pad(x, ((0, 0), (0, 0), (0, cout_p - cin)))

    def nconv(feat, w2, b):
        return _gather_conv_reference(feat, idx, w2, b)

    h = jax.nn.relu(inorm(nconv(x0, params["enc1_w"], params["enc1_b"]),
                          params["enc1_gamma"], params["enc1_beta"]))
    y2 = inorm(nconv(h, params["enc2_w"], params["enc2_b"]),
               params["enc2_gamma"], params["enc2_beta"])
    out = jax.nn.relu(x0 + y2)
    return jnp.transpose(out[..., :cout], (0, 2, 1))


# ------------------------------------------------------------------- main ---

if __name__ == "__main__":
    B, Cin, Cout, N, K = 2, 4, 8, 256, 8
    key = jax.random.PRNGKey(0)
    k_in, k_pts, k_par = jax.random.split(key, 3)

    input_bcn = jax.random.normal(k_in, (B, Cin, N), jnp.float32)    # feats (NCW)
    points_b3n = jax.random.normal(k_pts, (B, 3, N), jnp.float32)    # xyz (NCW)
    params = init_block_params(k_par, Cin, Cout, K)

    # Small tiles so the demo exercises: multiple row tiles, the n_split=2
    # megacore path, the multi-chunk KNN merge, and the two-pass InstanceNorm.
    x_out, pts, idx = block_forward(params, input_bcn, points_b3n,
                                    tile_n=64, knn_tile_r=64, knn_tile_c=128)
    jax.block_until_ready((x_out, pts, idx))

    assert x_out.shape == (B, Cout, N)
    assert pts.shape == (B, 3, N)
    assert idx.shape == (B, N, K)
    assert bool(jnp.all(jnp.isfinite(x_out)))
    assert bool(jnp.all((idx >= 0) & (idx < N)))

    # KNN checks (robust to tie ordering).
    pts_rows = jnp.transpose(points_b3n, (0, 2, 1))
    d2 = jnp.sum((pts_rows[:, :, None, :] - pts_rows[:, None, :, :]) ** 2, -1)
    assert bool(jnp.all(idx[:, :, 0] == jnp.arange(N)[None, :]))      # self first
    si = jnp.sort(idx, axis=-1)
    assert bool(jnp.all(si[..., 1:] > si[..., :-1]))                  # unique
    sel_d = jnp.sort(jnp.take_along_axis(d2, idx, axis=-1), axis=-1)
    ref_d = jnp.sort(d2, axis=-1)[..., :K]
    assert bool(jnp.allclose(sel_d, ref_d, atol=1e-4, rtol=1e-4))

    # Full block vs pure-JAX f32 reference (tolerance covers bf16 inter-stage).
    ref = _reference_block(params, input_bcn, idx)
    assert bool(jnp.allclose(x_out, ref, atol=0.1, rtol=0.1))

    print("KERNEL_OK")
</pallas_src>

<mosaic_0001>
module attributes {stable_mosaic.version = 11 : i64} {
  func.func @_dense_conv_kernel(%arg0: i32, %arg1: i32, %arg2: i32, %arg3: memref<1x64x4xbf16, #tpu.memory_space<vmem>>, %arg4: memref<4x128xbf16, #tpu.memory_space<vmem>>, %arg5: memref<1x128xf32, #tpu.memory_space<vmem>>, %arg6: memref<1x64x128xf32, #tpu.memory_space<vmem>>, %arg7: memref<1x1x1x128xf32, #tpu.memory_space<vmem>>, %arg8: memref<1x1x1x128xf32, #tpu.memory_space<vmem>>) attributes {dimension_semantics = [#tpu.dimension_semantics<parallel>, #tpu.dimension_semantics<parallel>, #tpu.dimension_semantics<arbitrary>], iteration_bounds = array<i64: 2, 2, 2>, scalar_prefetch = 0 : i64, scratch_operands = 0 : i64, tpu.core_type = #tpu.core_type<tc>, window_params = [{transform_indices = @transform_0, window_bounds = array<i64: 1, 64, 4>}, {pipeline_mode = #tpu.pipeline_mode<synchronous>, transform_indices = @transform_1, window_bounds = array<i64: 4, 128>}, {pipeline_mode = #tpu.pipeline_mode<synchronous>, transform_indices = @transform_2, window_bounds = array<i64: 1, 128>}, {transform_indices = @transform_3, window_bounds = array<i64: 1, 64, 128>}, {transform_indices = @transform_4, window_bounds = array<i64: 1, 1, 1, 128>}, {transform_indices = @transform_5, window_bounds = array<i64: 1, 1, 1, 128>}]} {
    %c0 = arith.constant 0 : index
    %c0_0 = arith.constant 0 : index
    %c0_1 = arith.constant 0 : index
    %0 = vector.load %arg3[%c0, %c0_0, %c0_1] : memref<1x64x4xbf16, #tpu.memory_space<vmem>>, vector<1x64x4xbf16>
    %1 = vector.shape_cast %0 : vector<1x64x4xbf16> to vector<64x4xbf16>
    %c0_2 = arith.constant 0 : index
    %c0_3 = arith.constant 0 : index
    %2 = vector.load %arg4[%c0_2, %c0_3] : memref<4x128xbf16, #tpu.memory_space<vmem>>, vector<4x128xbf16>
    %cst = arith.constant dense<0.000000e+00> : vector<64x128xf32>
    %3 = tpu.matmul %1, %2, %cst {dimension_numbers = #tpu.dot_dimension_numbers<[1], [0], [0], [1], [0, 0, 1, 1], [], []>} : vector<64x4xbf16>, vector<4x128xbf16>, vector<64x128xf32> -> vector<64x128xf32>
    %c0_4 = arith.constant 0 : index
    %c0_5 = arith.constant 0 : index
    %4 = vector.load %arg5[%c0_4, %c0_5] : memref<1x128xf32, #tpu.memory_space<vmem>>, vector<1x128xf32>
    %5 = vector.broadcast %4 : vector<1x128xf32> to vector<64x128xf32>
    %6 = arith.addf %3, %5 : vector<64x128xf32>
    %c0_6 = arith.constant 0 : index
    %c0_7 = arith.constant 0 : index
    %c0_8 = arith.constant 0 : index
    %7 = vector.load %arg6[%c0_6, %c0_7, %c0_8] : memref<1x64x128xf32, #tpu.memory_space<vmem>>, vector<1x64x128xf32>
    %8 = vector.shape_cast %7 : vector<1x64x128xf32> to vector<64x128xf32>
    %9 = vector.shape_cast %6 : vector<64x128xf32> to vector<1x64x128xf32>
    tpu.vector_store %arg6[%c0_6, %c0_7, %c0_8], %9 {strides = array<i32>} : memref<1x64x128xf32, #tpu.memory_space<vmem>>, vector<1x64x128xf32>,
    %c0_i32 = arith.constant 0 : i32
    %10 = arith.cmpi eq, %arg2, %c0_i32 : i32
    %11 = arith.extui %10 : i1 to i32
    %c0_i32_9 = arith.constant 0 : i32
    %12 = arith.cmpi ne, %11, %c0_i32_9 : i32
    scf.if %12 {
      %cst_28 = arith.constant 0.000000e+00 : f32
      %26 = vector.broadcast %cst_28 : f32 to vector<1x1x1x128xf32>
      %c0_29 = arith.constant 0 : index
      %c0_30 = arith.constant 0 : index
      %c0_31 = arith.constant 0 : index
      %c0_32 = arith.constant 0 : index
      %27 = vector.load %arg7[%c0_29, %c0_30, %c0_31, %c0_32] : memref<1x1x1x128xf32, #tpu.memory_space<vmem>>, vector<1x1x1x128xf32>
      tpu.vector_store %arg7[%c0_29, %c0_30, %c0_31, %c0_32], %26 {strides = array<i32>} : memref<1x1x1x128xf32, #tpu.memory_space<vmem>>, vector<1x1x1x128xf32>,
      %cst_33 = arith.constant 0.000000e+00 : f32
      %28 = vector.broadcast %cst_33 : f32 to vector<1x1x1x128xf32>
      %c0_34 = arith.constant 0 : index
      %c0_35 = arith.constant 0 : index
      %c0_36 = arith.constant 0 : index
      %c0_37 = arith.constant 0 : index
      %29 = vector.load %arg8[%c0_34, %c0_35, %c0_36, %c0_37] : memref<1x1x1x128xf32, #tpu.memory_space<vmem>>, vector<1x1x1x128xf32>
      tpu.vector_store %arg8[%c0_34, %c0_35, %c0_36, %c0_37], %28 {strides = array<i32>} : memref<1x1x1x128xf32, #tpu.memory_space<vmem>>, vector<1x1x1x128xf32>,
    } else {
    }
    %c0_10 = arith.constant 0 : index
    %c0_11 = arith.constant 0 : index
    %c0_12 = arith.constant 0 : index
    %c0_13 = arith.constant 0 : index
    %13 = vector.load %arg7[%c0_10, %c0_11, %c0_12, %c0_13] : memref<1x1x1x128xf32, #tpu.memory_space<vmem>>, vector<1x1x1x128xf32>
    %cst_14 = arith.constant dense<0.000000e+00> : vector<128xf32>
    %14 = vector.multi_reduction <add>, %6, %cst_14 [0] : vector<64x128xf32> to vector<128xf32>
    %15 = vector.shape_cast %14 : vector<128xf32> to vector<1x128xf32>
    %16 = vector.shape_cast %15 : vector<1x128xf32> to vector<1x1x1x128xf32>
    %17 = arith.addf %13, %16 : vector<1x1x1x128xf32>
    %c0_15 = arith.constant 0 : index
    %c0_16 = arith.constant 0 : index
    %c0_17 = arith.constant 0 : index
    %c0_18 = arith.constant 0 : index
    %18 = vector.load %arg7[%c0_15, %c0_16, %c0_17, %c0_18] : memref<1x1x1x128xf32, #tpu.memory_space<vmem>>, vector<1x1x1x128xf32>
    tpu.vector_store %arg7[%c0_15, %c0_16, %c0_17, %c0_18], %17 {strides = array<i32>} : memref<1x1x1x128xf32, #tpu.memory_space<vmem>>, vector<1x1x1x128xf32>,
    %c0_19 = arith.constant 0 : index
    %c0_20 = arith.constant 0 : index
    %c0_21 = arith.constant 0 : index
    %c0_22 = arith.constant 0 : index
    %19 = vector.load %arg8[%c0_19, %c0_20, %c0_21, %c0_22] : memref<1x1x1x128xf32, #tpu.memory_space<vmem>>, vector<1x1x1x128xf32>
    %20 = arith.mulf %6, %6 : vector<64x128xf32>
    %cst_23 = arith.constant dense<0.000000e+00> : vector<128xf32>
    %21 = vector.multi_reduction <add>, %20, %cst_23 [0] : vector<64x128xf32> to vector<128xf32>
    %22 = vector.shape_cast %21 : vector<128xf32> to vector<1x128xf32>
    %23 = vector.shape_cast %22 : vector<1x128xf32> to vector<1x1x1x128xf32>
    %24 = arith.addf %19, %23 : vector<1x1x1x128xf32>
    %c0_24 = arith.constant 0 : index
    %c0_25 = arith.constant 0 : index
    %c0_26 = arith.constant 0 : index
    %c0_27 = arith.constant 0 : index
    %25 = vector.load %arg8[%c0_24, %c0_25, %c0_26, %c0_27] : memref<1x1x1x128xf32, #tpu.memory_space<vmem>>, vector<1x1x1x128xf32>
    tpu.vector_store %arg8[%c0_24, %c0_25, %c0_26, %c0_27], %24 {strides = array<i32>} : memref<1x1x1x128xf32, #tpu.memory_space<vmem>>, vector<1x1x1x128xf32>,
    return
  }
  func.func @transform_0(%arg0: i32, %arg1: i32, %arg2: i32) -> (i32, i32, i32) {
    %c2_i32 = arith.constant 2 : i32
    %0 = arith.muli %arg1, %c2_i32 : i32
    %1 = arith.addi %0, %arg2 : i32
    %c0_i32 = arith.constant 0 : i32
    %c0_i32_0 = arith.constant 0 : i32
    return %arg0, %1, %c0_i32 : i32, i32, i32
  }
  func.func @transform_1(%arg0: i32, %arg1: i32, %arg2: i32) -> (i32, i32) {
    %c0_i32 = arith.constant 0 : i32
    %c0_i32_0 = arith.constant 0 : i32
    %c0_i32_1 = arith.constant 0 : i32
    return %c0_i32, %c0_i32_0 : i32, i32
  }
  func.func @transform_2(%arg0: i32, %arg1: i32, %arg2: i32) -> (i32, i32) {
    %c0_i32 = arith.constant 0 : i32
    %c0_i32_0 = arith.constant 0 : i32
    %c0_i32_1 = arith.constant 0 : i32
    return %c0_i32, %c0_i32_0 : i32, i32
  }
  func.func @transform_3(%arg0: i32, %arg1: i32, %arg2: i32) -> (i32, i32, i32) {
    %c2_i32 = arith.constant 2 : i32
    %0 = arith.muli %arg1, %c2_i32 : i32
    %1 = arith.addi %0, %arg2 : i32
    %c0_i32 = arith.constant 0 : i32
    %c0_i32_0 = arith.constant 0 : i32
    return %arg0, %1, %c0_i32 : i32, i32, i32
  }
  func.func @transform_4(%arg0: i32, %arg1: i32, %arg2: i32) -> (i32, i32, i32, i32) {
    %c0_i32 = arith.constant 0 : i32
    %c0_i32_0 = arith.constant 0 : i32
    %c0_i32_1 = arith.constant 0 : i32
    return %arg0, %arg1, %c0_i32, %c0_i32_0 : i32, i32, i32, i32
  }
  func.func @transform_5(%arg0: i32, %arg1: i32, %arg2: i32) -> (i32, i32, i32, i32) {
    %c0_i32 = arith.constant 0 : i32
    %c0_i32_0 = arith.constant 0 : i32
    %c0_i32_1 = arith.constant 0 : i32
    return %arg0, %arg1, %c0_i32, %c0_i32_0 : i32, i32, i32, i32
  }
}

</mosaic_0001>

<llo_original>
// kernel: tpu_custom_call.1
$region0: #{tpu_custom_call.1}
  #allocation0 [shape = 'u32[]', space=smem, size = 0x4, offset = 0x4, fixed_abs, tag = 'smem constant byte address 0x4 - core index']
  #allocation1 [shape = 'u32[144,128]{1,0:T(1,128)}', space=vmem, size = 0x12000, scoped, tag = 'internal scratch']
  %s0 = inlined_call_operand.vmem [shape: bf16[2,256,4], index: 0, kind: input, shape index: {}]
  %s1 = inlined_call_operand.vmem [shape: bf16[4,128], index: 1, kind: input, shape index: {}]
  %s2 = inlined_call_operand.vmem [shape: f32[1,128], index: 2, kind: input, shape index: {}]
  %s3 = inlined_call_operand.hbm [shape: f32[2,256,128], index: 3, kind: output, shape index: {0}]
  %s4 = inlined_call_operand.hbm [shape: f32[2,2,1,128], index: 4, kind: output, shape index: {1}]
  %s5 = inlined_call_operand.hbm [shape: f32[2,2,1,128], index: 5, kind: output, shape index: {2}]
  %6 = xla_tuple %s3, %s4, %s5
  %s7 = sld [smem:[#allocation0]]
  $region65: #{tpu_custom_call.1} parent=0
    _
  %s9 = ssub.s32 1, %s7
  %s10 = scalar_select 0, %s9, %s7
  $region1: #{tpu_custom_call.1} parent=0
    #allocation2 [shape = 'u8[65536]{0}', space=vmem, size = 0x10000, scoped, tag = 'output window, operand 0']
    #allocation3 [shape = 's32[2]{0}', space=sflag, size = 0x8, scoped, tag = 'scoped memory for tpu_custom_call.1']
    #allocation4 [shape = 'u8[1024]{0}', space=vmem, size = 0x400, scoped, tag = 'output window, operand 1']
    #allocation5 [shape = 's32[2]{0}', space=sflag, size = 0x8, scoped, tag = 'scoped memory for tpu_custom_call.1']
    #allocation6 [shape = 'u8[1024]{0}', space=vmem, size = 0x400, scoped, tag = 'output window, operand 2']
    %11 = vsyncpa [#allocation3], 0
    %s12 = scalar_lea.sflag [#allocation3], 1
    %13 = vsyncpa %s12, 0
    %14 = vsyncpa [#allocation5], 0
    %s15 = scalar_lea.sflag [#allocation5], 1
    %16 = vsyncpa %s15, 0
    loop: start=0, step=1, limit=10
    $region2: #{tpu_custom_call.1} parent=1 // loop_pre_header
      _
    $region3: #{tpu_custom_call.1} parent=1 // loop_header
      %s18 = sphi 0, %s22
      %p19 = scmp.ge.s32.totalorder %s18, 10
      %s25 = sphi 0, %s44
      %s26 = sphi 0, %s40
      %s27 = sphi 0, %s36
      %s28 = sphi 0, %s25
      %s29 = sphi 0, %s26
      %s30 = sphi 0, %s27
      %s31 = sphi 0, %s28
      %s32 = sphi 0, %s29
      %s33 = sphi 0, %s30
      %s53 = sphi 0, %s55
      %s56 = sphi 0, %s53
      %s57 = sphi 0, %s56
      %s73 = sphi 0, %s57
      %s77 = sphi 0, %s77
      %s79 = sphi 0, %s77
      %s80 = sphi 0, %s79
      %s94 = sphi 0, %s80
      %s98 = sphi 0, %s98
      %s100 = sphi 0, %s98
      %s101 = sphi 0, %s100
      %s115 = sphi 0, %s101
      %s127 = sphi 0, %s129
      %s130 = sphi 0, %s127
      %s131 = sphi 0, %s130
      %s147 = sphi 0, %s131
      %s155 = sphi 0, %s157
      %s158 = sphi 0, %s155
      %s159 = sphi 0, %s158
      %s175 = sphi 0, %s159
      %s183 = sphi 0, %s185
      %s186 = sphi 0, %s183
      %s187 = sphi 0, %s186
      %s203 = sphi 0, %s187
    $region4: #{tpu_custom_call.1} parent=1 // loop_header_branch
      %21 = sbr.rel (%p19) target = $region8
    $region5: #{tpu_custom_call.1} parent=1 // loop_body
      %s23 = ssub.s32 %s18, 1
      %s24 = ssub.s32 %s18, 2
      %s34 = sadd.s32 1, %s27
      %p35 = scmp.ge.s32.totalorder %s34, 2
      %s36 = scalar_select %p35, 0, %s34
      %s37 = sadd.s32 1, %s26
      %s38 = scalar_select %p35, %s37, %s26
      %p39 = scmp.ge.s32.totalorder %s38, 2
      %s40 = scalar_select %p39, 0, %s38
      %s41 = sadd.s32 1, %s25
      %s42 = scalar_select %p39, %s41, %s25
      %p43 = scmp.ge.s32.totalorder %s42, 2
      %s44 = scalar_select %p43, 0, %s42
      %s45 = smul.u32 %s26, 2
      %s46 = sadd.s32 %s45, %s27
      %s47 = smul.u32 %s40, 2
      %s48 = sadd.s32 %s47, %s36
      %s49 = ssub.s32 %s25, %s44
      %s50 = ssub.s32 %s46, %s48
      %s51 = sor.u32 %s49, %s50
      %p52 = scmp.eq.s32.totalorder %s51, 0
      %s54 = sadd.s32 %s53, 1
      %s55 = scalar_select %p52, %s53, %s54
      %p58 = pneg %p52
      %p59 = scmp.eq.s32.totalorder %s18, 7
      %p60 = por %p58, %p59
      %p61 = scmp.ne.s32.totalorder %s53, %s56
      %p62 = scmp.eq.s32.totalorder %s18, 0
      %p63 = por %p61, %p62
      %p64 = scmp.ne.s32.totalorder %s53, %s56
      %p65 = scmp.eq.s32.totalorder %s23, 7
      %p66 = por %p64, %p65
      %p67 = scmp.ne.s32.totalorder %s56, %s57
      %p68 = scmp.eq.s32.totalorder %s23, 0
      %p69 = por %p67, %p68
      %p70 = scmp.ne.s32.totalorder %s56, %s57
      %p71 = scmp.eq.s32.totalorder %s24, 7
      %p72 = por %p70, %p71
      %p74 = scmp.ne.s32.totalorder %s57, %s73
      %p75 = scmp.eq.s32.totalorder %s24, 0
      %p76 = por %p74, %p75
      %s78 = sadd.s32 %s77, 1
      %p81 = scmp.eq.s32.totalorder %s18, 7
      %p82 = scmp.ne.s32.totalorder %s77, %s79
      %p83 = scmp.eq.s32.totalorder %s18, 0
      %p84 = por %p82, %p83
      %p85 = scmp.ne.s32.totalorder %s77, %s79
      %p86 = scmp.eq.s32.totalorder %s23, 7
      %p87 = por %p85, %p86
      %p88 = scmp.ne.s32.totalorder %s79, %s80
      %p89 = scmp.eq.s32.totalorder %s23, 0
      %p90 = por %p88, %p89
      %p91 = scmp.ne.s32.totalorder %s79, %s80
      %p92 = scmp.eq.s32.totalorder %s24, 7
      %p93 = por %p91, %p92
      %p95 = scmp.ne.s32.totalorder %s80, %s94
      %p96 = scmp.eq.s32.totalorder %s24, 0
      %p97 = por %p95, %p96
      %s99 = sadd.s32 %s98, 1
      %p102 = scmp.eq.s32.totalorder %s18, 7
      %p103 = scmp.ne.s32.totalorder %s98, %s100
      %p104 = scmp.eq.s32.totalorder %s18, 0
      %p105 = por %p103, %p104
      %p106 = scmp.ne.s32.totalorder %s98, %s100
      %p107 = scmp.eq.s32.totalorder %s23, 7
      %p108 = por %p106, %p107
      %p109 = scmp.ne.s32.totalorder %s100, %s101
      %p110 = scmp.eq.s32.totalorder %s23, 0
      %p111 = por %p109, %p110
      %p112 = scmp.ne.s32.totalorder %s100, %s101
      %p113 = scmp.eq.s32.totalorder %s24, 7
      %p114 = por %p112, %p113
      %p116 = scmp.ne.s32.totalorder %s101, %s115
      %p117 = scmp.eq.s32.totalorder %s24, 0
      %p118 = por %p116, %p117
      %s119 = smul.u32 %s26, 2
      %s120 = sadd.s32 %s119, %s27
      %s121 = smul.u32 %s40, 2
      %s122 = sadd.s32 %s121, %s36
      %s123 = ssub.s32 %s25, %s44
      %s124 = ssub.s32 %s120, %s122
      %s125 = sor.u32 %s123, %s124
      %p126 = scmp.eq.s32.totalorder %s125, 0
      %s128 = sadd.s32 %s127, 1
      %s129 = scalar_select %p126, %s127, %s128
      %p132 = pneg %p126
      %p133 = scmp.eq.s32.totalorder %s18, 7
      %p134 = por %p132, %p133
      %p135 = scmp.ne.s32.totalorder %s127, %s130
      %p136 = scmp.eq.s32.totalorder %s18, 0
      %p137 = por %p135, %p136
      %p138 = scmp.ne.s32.totalorder %s127, %s130
      %p139 = scmp.eq.s32.totalorder %s23, 7
      %p140 = por %p138, %p139
      %p141 = scmp.ne.s32.totalorder %s130, %s131
      %p142 = scmp.eq.s32.totalorder %s23, 0
      %p143 = por %p141, %p142
      %p144 = scmp.ne.s32.totalorder %s130, %s131
      %p145 = scmp.eq.s32.totalorder %s24, 7
      %p146 = por %p144, %p145
      %p148 = scmp.ne.s32.totalorder %s131, %s147
      %p149 = scmp.eq.s32.totalorder %s24, 0
      %p150 = por %p148, %p149
      %s151 = ssub.s32 %s25, %s44
      %s152 = ssub.s32 %s26, %s40
      %s153 = sor.u32 %s151, %s152
      %p154 = scmp.eq.s32.totalorder %s153, 0
      %s156 = sadd.s32 %s155, 1
      %s157 = scalar_select %p154, %s155, %s156
      %p160 = pneg %p154
      %p161 = scmp.eq.s32.totalorder %s18, 7
      %p162 = por %p160, %p161
      %p163 = scmp.ne.s32.totalorder %s155, %s158
      %p164 = scmp.eq.s32.totalorder %s18, 0
      %p165 = por %p163, %p164
      %p166 = scmp.ne.s32.totalorder %s155, %s158
      %p167 = scmp.eq.s32.totalorder %s23, 7
      %p168 = por %p166, %p167
      %p169 = scmp.ne.s32.totalorder %s158, %s159
      %p170 = scmp.eq.s32.totalorder %s23, 0
      %p171 = por %p169, %p170
      %p172 = scmp.ne.s32.totalorder %s158, %s159
      %p173 = scmp.eq.s32.totalorder %s24, 7
      %p174 = por %p172, %p173
      %p176 = scmp.ne.s32.totalorder %s159, %s175
      %p177 = scmp.eq.s32.totalorder %s24, 0
      %p178 = por %p176, %p177
      %s179 = ssub.s32 %s25, %s44
      %s180 = ssub.s32 %s26, %s40
      %s181 = sor.u32 %s179, %s180
      %p182 = scmp.eq.s32.totalorder %s181, 0
      %s184 = sadd.s32 %s183, 1
      %s185 = scalar_select %p182, %s183, %s184
      %p188 = pneg %p182
      %p189 = scmp.eq.s32.totalorder %s18, 7
      %p190 = por %p188, %p189
      %p191 = scmp.ne.s32.totalorder %s183, %s186
      %p192 = scmp.eq.s32.totalorder %s18, 0
      %p193 = por %p191, %p192
      %p194 = scmp.ne.s32.totalorder %s183, %s186
      %p195 = scmp.eq.s32.totalorder %s23, 7
      %p196 = por %p194, %p195
      %p197 = scmp.ne.s32.totalorder %s186, %s187
      %p198 = scmp.eq.s32.totalorder %s23, 0
      %p199 = por %p197, %p198
      %p200 = scmp.ne.s32.totalorder %s186, %s187
      %p201 = scmp.eq.s32.totalorder %s24, 7
      %p202 = por %p200, %p201
      %p204 = scmp.ne.s32.totalorder %s187, %s203
      %p205 = scmp.eq.s32.totalorder %s24, 0
      %p206 = por %p204, %p205
      %p207 = scmp.le.s32.totalorder 1, %s18
      %p208 = scmp.lt.s32.totalorder %s18, 9
      %p209 = pnand %p207, %p208
      %p210 = pneg %p209
      // Predicated region
      $region9: #{tpu_custom_call.1} parent=5 // pred_check
        _
      $region10: #{tpu_custom_call.1} parent=5 // pred_check_branch
        %212 = sbr.rel (%p209) target = $region12
      $region11: #{tpu_custom_call.1} parent=5 // pred_region
        %s213 = ssub.s32 %s18, 1
        // Predicated region
        $region13: #{tpu_custom_call.1} parent=11 // pred_check
          %p214 = pneg %p90
        $region14: #{tpu_custom_call.1} parent=11 // pred_check_branch
          %216 = sbr.rel (%p214) target = $region16
        $region15: #{tpu_custom_call.1} parent=11 // pred_region
          _
        $region16: #{tpu_custom_call.1} parent=11 // pred_fallthru
          _
        // Predicated region
        $region17: #{tpu_custom_call.1} parent=11 // pred_check
          %p217 = pneg %p111
        $region18: #{tpu_custom_call.1} parent=11 // pred_check_branch
          %219 = sbr.rel (%p217) target = $region20
        $region19: #{tpu_custom_call.1} parent=11 // pred_region
          _
        $region20: #{tpu_custom_call.1} parent=11 // pred_fallthru
          _
      $region12: #{tpu_custom_call.1} parent=5 // pred_fallthru
        _
      %p220 = scmp.lt.s32.totalorder %s18, 8
      // Predicated region
      $region21: #{tpu_custom_call.1} parent=5 // pred_check
        %p221 = pneg %p220
      $region22: #{tpu_custom_call.1} parent=5 // pred_check_branch
        %223 = sbr.rel (%p221) target = $region24
      $region23: #{tpu_custom_call.1} parent=5 // pred_region
        // Predicated region
        $region25: #{tpu_custom_call.1} parent=23 // pred_check
          %p224 = pneg %p63
        $region26: #{tpu_custom_call.1} parent=23 // pred_check_branch
          %226 = sbr.rel (%p224) target = $region28
        $region27: #{tpu_custom_call.1} parent=23 // pred_region
          %s227 = smul.u32 %s26, 2
          %s228 = sadd.s32 %s227, %s27
          %s229 = smul.u32 8, %s228
          %p230 = scmp.lt.s32.totalorder %s25, 1
          %s231 = scalar_select %p230, %s25, 1
          %p232 = scmp.lt.s32.totalorder %s229, 31
          %s233 = scalar_select %p232, %s229, 31
          %s234 = smul.addr %s231, 32
          %s235 = sadd.s32 %s233, %s234
          %s236 = smul.addr %s235, 4
          %s237 = scalar_lea.vmem %s0, %s236
          %s238 = smul.u32 %s26, 2
          %s239 = sadd.s32 %s238, %s27
          %s240 = smul.u32 8, %s239
        $region28: #{tpu_custom_call.1} parent=23 // pred_fallthru
          _
      $region24: #{tpu_custom_call.1} parent=5 // pred_fallthru
        _
      %p241 = scmp.le.s32.totalorder 1, %s18
      %p242 = scmp.lt.s32.totalorder %s18, 9
      %p243 = pnand %p241, %p242
      %p244 = pneg %p243
      // Predicated region
      $region29: #{tpu_custom_call.1} parent=5 // pred_check
        _
      $region30: #{tpu_custom_call.1} parent=5 // pred_check_branch
        %246 = sbr.rel (%p243) target = $region32
      $region31: #{tpu_custom_call.1} parent=5 // pred_region
        %s247 = ssub.s32 %s18, 1
        %s248 = smul.u32 %s29, 2
        %s249 = sadd.s32 %s248, %s30
        %s250 = smul.u32 8, %s249
        %p251 = scmp.lt.s32.totalorder %s28, 1
        %s252 = scalar_select %p251, %s28, 1
        %p253 = scmp.lt.s32.totalorder %s250, 31
        %s254 = scalar_select %p253, %s250, 31
        %s255 = smul.addr %s252, 32
        %s256 = sadd.s32 %s254, %s255
        %s257 = smul.addr %s256, 4
        %s258 = scalar_lea.vmem %s0, %s257
        %p259 = pneg %p69
        %p260 = pneg %p66
        %p261 = pneg %p90
        %p262 = pneg %p87
        %p263 = pneg %p111
        %p264 = pneg %p108
        %p265 = pneg %p143
        %p266 = pneg %p140
        %s267 = sand.u32 %s130, 1
        %s268 = scalar_lea.sflag [#allocation3], %s267
        %s269 = sand.u32 %s130, 1
        %s270 = smul.addr %s269, 64
        %s271 = scalar_lea.vmem [#allocation2], %s270
        %p272 = pneg %p171
        %p273 = pneg %p168
        %s274 = sand.u32 %s23, 1
        %s275 = scalar_lea.sflag [#allocation5], %s274
        %s276 = sand.u32 %s158, 1
        %s277 = scalar_lea.vmem [#allocation4], %s276
        %p278 = pneg %p199
        %p279 = pneg %p196
        %s280 = sand.u32 %s23, 1
        %s281 = scalar_lea.sflag [#allocation5], %s280
        %s282 = sand.u32 %s186, 1
        %s283 = scalar_lea.vmem [#allocation6], %s282
        %s284 = smul.u32 %s29, 2
        %s285 = sadd.s32 %s284, %s30
        %s286 = smul.u32 8, %s285
        %p287 = scmp.lt.s32.totalorder %s28, 1
        %s288 = scalar_select %p287, %s28, 1
        %p289 = scmp.lt.s32.totalorder %s286, 31
        %s290 = scalar_select %p289, %s286, 31
        %s291 = smul.addr %s288, 32
        %s292 = sadd.s32 %s290, %s291
        %s293 = smul.addr %s292, 4
        %s294 = scalar_lea.vmem %s0, %s293
        %s295 = smul.u32 %s29, 2
        %s296 = sadd.s32 %s295, %s30
        %s297 = smul.u32 8, %s296
        %s298 = smul.u32 %s29, 2
        %s299 = sadd.s32 %s298, %s30
        %s300 = smul.u32 8, %s299
        %v302 = vld [vmem:[%s294] sm:$0xf]
        %v303 = vld [vmem:[%s294 + $0x4] sm:$0xf]
        %v304 = vld [vmem:[%s294 + $0x8] sm:$0xf]
        %v305 = vld [vmem:[%s294 + $0xc] sm:$0xf]
        %v306 = vld [vmem:[%s294 + $0x10] sm:$0xf]
        %v307 = vld [vmem:[%s294 + $0x14] sm:$0xf]
        %v308 = vld [vmem:[%s294 + $0x18] sm:$0xf]
        %v309 = vld [vmem:[%s294 + $0x1c] sm:$0xf]
        %v310 = vld [vmem:[%s1] sm:$0x3]
        %v311 = vld [vmem:[%s2] sm:$0x1]
        %v313 = vlaneseq
        %v314 = vshrl.u32 %v313, 7
        %v315 = vsub.s32 0, %v314
        %v316 = vrot.slane %v311, %v315
        %v326 = vunpack.c.l.b16 %v302
        %v327 = vunpack.c.l.b16 %v303
        %v328 = vunpack.c.l.b16 %v304
        %v329 = vunpack.c.l.b16 %v305
        %v330 = vunpack.c.l.b16 %v306
        %v331 = vunpack.c.l.b16 %v307
        %v332 = vunpack.c.l.b16 %v308
        %v333 = vunpack.c.l.b16 %v309
        %v334 = vpack.c.b16 %v327, %v326
        %v335 = vpack.c.b16 %v329, %v328
        %v336 = vpack.c.b16 %v331, %v330
        %v337 = vpack.c.b16 %v333, %v332
        %vm338 = vcmask 31744
        %v340 = vsel %vm338, %v334, 0
        %v343 = vsel %vm338, %v335, 0
        %v346 = vsel %vm338, %v336, 0
        %v349 = vsel %vm338, %v337, 0
        %vm351 = vcmask 1041408
        %v353 = vsel %vm351, %v310, 0
        %355 = vmatprep.subr.bf16.mxu0 0
        %356 = vmatpush1.bf16.msra.mxu0 0
        %357 = vmatprep.subr.bf16.mxu0 0
        %358 = vmatpush1.bf16.msra.mxu0 0
        %359 = vmatprep.subr.bf16.mxu0 0
        %360 = vmatpush1.bf16.msra.mxu0 0
        %361 = vmatprep.subr.bf16.mxu0 0
        %362 = vmatpush1.bf16.msra.mxu0 0
        %363 = vmatprep.subr.bf16.mxu0 0
        %364 = vmatpush1.bf16.msra.mxu0 0
        %365 = vmatprep.subr.bf16.mxu0 0
        %366 = vmatpush1.bf16.msra.mxu0 0
        %367 = vmatprep.subr.bf16.mxu0 0
        %368 = vmatpush1.bf16.msra.mxu0 0
        %369 = vmatprep.subr.bf16.mxu0 0
        %370 = vmatpush1.bf16.msra.mxu0 %v353
        %371 = vmatprep.subr.bf16.mxu0 0
        %372 = vmatpush2.bf16.msra.mxu0 0
        %373 = vmatprep.subr.bf16.mxu0 0
        %374 = vmatpush2.bf16.msra.mxu0 0
        %375 = vmatprep.subr.bf16.mxu0 0
        %376 = vmatpush2.bf16.msra.mxu0 0
        %377 = vmatprep.subr.bf16.mxu0 0
        %378 = vmatpush2.bf16.msra.mxu0 0
        %379 = vmatprep.subr.bf16.mxu0 0
        %380 = vmatpush2.bf16.msra.mxu0 0
        %381 = vmatprep.subr.bf16.mxu0 0
        %382 = vmatpush2.bf16.msra.mxu0 0
        %383 = vmatprep.subr.bf16.mxu0 0
        %384 = vmatpush2.bf16.msra.mxu0 0
        %385 = vmatprep.subr.bf16.mxu0 0
        %386 = vmatpush2.bf16.msra.mxu0 0
        %387 = vmatprep.mubr.bf16.mxu0 0
        %388 = vmatmul.mubr.bf16.gmra.mxu0 %v340
        %v389 = vpop.f32.mrf.mxu0
        %v390 = vadd.f32 %v316, %v389
        %v391 = vpop.f32.mrf.mxu0
        %v392 = vpop.f32.mrf.mxu0
        %v393 = vadd.f32 %v316, %v392
        %v394 = vpop.f32.mrf.mxu0
        %395 = vmatprep.mubr.bf16.mxu0 0
        %396 = vmatmul.mubr.bf16.gmra.mxu0 %v343
        %v397 = vpop.f32.mrf.mxu0
        %v398 = vadd.f32 %v316, %v397
        %v399 = vpop.f32.mrf.mxu0
        %v400 = vpop.f32.mrf.mxu0
        %v401 = vadd.f32 %v316, %v400
        %v402 = vpop.f32.mrf.mxu0
        %403 = vmatprep.mubr.bf16.mxu0 0
        %404 = vmatmul.mubr.bf16.gmra.mxu0 %v346
        %v405 = vpop.f32.mrf.mxu0
        %v406 = vadd.f32 %v316, %v405
        %v407 = vpop.f32.mrf.mxu0
        %v408 = vpop.f32.mrf.mxu0
        %v409 = vadd.f32 %v316, %v408
        %v410 = vpop.f32.mrf.mxu0
        %411 = vmatprep.mubr.bf16.mxu0 0
        %412 = vmatmul.mubr.bf16.gmra.mxu0 %v349
        %v413 = vpop.f32.mrf.mxu0
        %v414 = vadd.f32 %v316, %v413
        %v415 = vpop.f32.mrf.mxu0
        %v416 = vpop.f32.mrf.mxu0
        %v417 = vadd.f32 %v316, %v416
        %v418 = vpop.f32.mrf.mxu0
        %419 = vdwg.mxu0
        %420 = vst [vmem:[%s271] sm:$0xff] %v390
        %421 = vst [vmem:[%s271 + $0x8] sm:$0xff] %v393
        %422 = vst [vmem:[%s271 + $0x10] sm:$0xff] %v398
        %423 = vst [vmem:[%s271 + $0x18] sm:$0xff] %v401
        %424 = vst [vmem:[%s271 + $0x20] sm:$0xff] %v406
        %425 = vst [vmem:[%s271 + $0x28] sm:$0xff] %v409
        %426 = vst [vmem:[%s271 + $0x30] sm:$0xff] %v414
        %427 = vst [vmem:[%s271 + $0x38] sm:$0xff] %v417
        %p428 = scmp.eq.s32.totalorder %s30, 0
        // Predicated region
        $region33: #{tpu_custom_call.1} parent=31 // pred_check
          %p429 = pneg %p428
        $region34: #{tpu_custom_call.1} parent=31 // pred_check_branch
          %431 = sbr.rel (%p429) target = $region36
        $region35: #{tpu_custom_call.1} parent=31 // pred_region
          %432 = vst [vmem:[%s277] sm:$0x1] 0.0
          %433 = vst [vmem:[%s283] sm:$0x1] 0.0
        $region36: #{tpu_custom_call.1} parent=31 // pred_fallthru
          _
        %v434 = vld [vmem:[%s277] sm:$0x1]
        %v435 = vadd.f32 %v390, %v393
        %v436 = vadd.f32 %v435, %v398
        %v437 = vadd.f32 %v436, %v401
        %v438 = vadd.f32 %v437, %v406
        %v439 = vadd.f32 %v438, %v409
        %v440 = vadd.f32 %v439, %v414
        %v441 = vadd.f32 %v440, %v417
        %v442 = vrot.slane %v441, 4
        %v443 = vadd.f32 %v441, %v442
        %v444 = vrot.slane %v443, 2
        %v445 = vadd.f32 %v443, %v444
        %v446 = vrot.slane %v445, 1
        %v447 = vadd.f32 %v445, %v446
        %v448 = vadd.f32 %v434, %v447
        %449 = vst [vmem:[%s277] sm:$0x1] %v448
        %v450 = vld [vmem:[%s283] sm:$0x1]
        %v451 = vmul.f32 %v390, %v390
        %v452 = vmul.f32 %v393, %v393
        %v453 = vmul.f32 %v398, %v398
        %v454 = vmul.f32 %v401, %v401
        %v455 = vmul.f32 %v406, %v406
        %v456 = vmul.f32 %v409, %v409
        %v457 = vmul.f32 %v414, %v414
        %v458 = vmul.f32 %v417, %v417
        %v459 = vadd.f32 %v451, %v452
        %v460 = vadd.f32 %v459, %v453
        %v461 = vadd.f32 %v460, %v454
        %v462 = vadd.f32 %v461, %v455
        %v463 = vadd.f32 %v462, %v456
        %v464 = vadd.f32 %v463, %v457
        %v465 = vadd.f32 %v464, %v458
        %v466 = vrot.slane %v465, 4
        %v467 = vadd.f32 %v465, %v466
        %v468 = vrot.slane %v467, 2
        %v469 = vadd.f32 %v467, %v468
        %v470 = vrot.slane %v469, 1
        %v471 = vadd.f32 %v469, %v470
        %v472 = vadd.f32 %v450, %v471
        %473 = vst [vmem:[%s283] sm:$0x1] %v472
        %s474 = sand.u32 %s130, 1
        %s475 = scalar_lea.sflag [#allocation3], %s474
        %s476 = sand.u32 %s130, 1
        %s477 = smul.addr %s476, 64
        %s478 = scalar_lea.vmem [#allocation2], %s477
        %s479 = sand.u32 %s23, 1
        %s480 = scalar_lea.sflag [#allocation5], %s479
        %s481 = sand.u32 %s158, 1
        %s482 = scalar_lea.vmem [#allocation4], %s481
        %s483 = sand.u32 %s23, 1
        %s484 = scalar_lea.sflag [#allocation5], %s483
        %s485 = sand.u32 %s186, 1
        %s486 = scalar_lea.vmem [#allocation6], %s485
        // Predicated region
        $region37: #{tpu_custom_call.1} parent=31 // pred_check
          %p487 = pneg %p140
        $region38: #{tpu_custom_call.1} parent=31 // pred_check_branch
          %489 = sbr.rel (%p487) target = $region40
        $region39: #{tpu_custom_call.1} parent=31 // pred_region
          %s490 = smul.u32 %s29, 2
          %s491 = sadd.s32 %s490, %s30
          %s492 = smul.u32 8, %s491
          %s494 = ssub.s32 1024, 1024
          %495 = vsyncadd %s475, %s494
          %s496 = smul.addr %s28, 32
          %s497 = sadd.s32 %s492, %s496
          %s498 = smul.addr %s497, 128
          %s499 = scalar_lea.hbm %s3, %s498
          %s500 = sshll.u32 %s478, 4
          %s501 = int_to_ptr.vmem [resolvable:$true] %s500
          %506 = dma.vmem_to_hbm [thread:$0]  %s501, 1024, %s499, %s475, 128, 128, 8
        $region40: #{tpu_custom_call.1} parent=31 // pred_fallthru
          _
        // Predicated region
        $region41: #{tpu_custom_call.1} parent=31 // pred_check
          %p507 = pneg %p168
        $region42: #{tpu_custom_call.1} parent=31 // pred_check_branch
          %509 = sbr.rel (%p507) target = $region44
        $region43: #{tpu_custom_call.1} parent=31 // pred_region
          %s511 = ssub.s32 16, 16
          %512 = vsyncadd %s480, %s511
          %s513 = smul.addr %s28, 2
          %s514 = sadd.s32 %s29, %s513
          %s515 = smul.addr %s514, 16
          %s516 = scalar_lea.hbm %s4, %s515
          %s518 = sshll.u32 %s482, 4
          %s519 = int_to_ptr.vmem [resolvable:$true] %s518
          %521 = dma.vmem_to_hbm [thread:$0]  %s519, 16, %s516, %s480
        $region44: #{tpu_custom_call.1} parent=31 // pred_fallthru
          _
        // Predicated region
        $region45: #{tpu_custom_call.1} parent=31 // pred_check
          %p522 = pneg %p196
        $region46: #{tpu_custom_call.1} parent=31 // pred_check_branch
          %524 = sbr.rel (%p522) target = $region48
        $region47: #{tpu_custom_call.1} parent=31 // pred_region
          %s526 = ssub.s32 16, 16
          %527 = vsyncadd %s484, %s526
          %s528 = smul.addr %s28, 2
          %s529 = sadd.s32 %s29, %s528
          %s530 = smul.addr %s529, 16
          %s531 = scalar_lea.hbm %s5, %s530
          %s533 = sshll.u32 %s486, 4
          %s534 = int_to_ptr.vmem [resolvable:$true] %s533
          %536 = dma.vmem_to_hbm [thread:$0]  %s534, 16, %s531, %s484
        $region48: #{tpu_custom_call.1} parent=31 // pred_fallthru
          _
      $region32: #{tpu_custom_call.1} parent=5 // pred_fallthru
        _
      %p537 = scmp.le.s32.totalorder 2, %s18
      // Predicated region
      $region49: #{tpu_custom_call.1} parent=5 // pred_check
        %p538 = pneg %p537
      $region50: #{tpu_custom_call.1} parent=5 // pred_check_branch
        %540 = sbr.rel (%p538) target = $region52
      $region51: #{tpu_custom_call.1} parent=5 // pred_region
        %s541 = ssub.s32 %s18, 2
        // Predicated region
        $region53: #{tpu_custom_call.1} parent=51 // pred_check
          %p542 = pneg %p146
        $region54: #{tpu_custom_call.1} parent=51 // pred_check_branch
          %544 = sbr.rel (%p542) target = $region56
        $region55: #{tpu_custom_call.1} parent=51 // pred_region
          %s545 = sand.u32 %s131, 1
          %s546 = scalar_lea.sflag [#allocation3], %s545
          %s547 = sand.u32 %s131, 1
          %s548 = smul.addr %s547, 64
          %s549 = scalar_lea.vmem [#allocation2], %s548
          %550 = dma.done %s546, 1024
        $region56: #{tpu_custom_call.1} parent=51 // pred_fallthru
          _
        // Predicated region
        $region57: #{tpu_custom_call.1} parent=51 // pred_check
          %p551 = pneg %p174
        $region58: #{tpu_custom_call.1} parent=51 // pred_check_branch
          %553 = sbr.rel (%p551) target = $region60
        $region59: #{tpu_custom_call.1} parent=51 // pred_region
          %s554 = sand.u32 %s24, 1
          %s555 = scalar_lea.sflag [#allocation5], %s554
          %s556 = sand.u32 %s159, 1
          %s557 = scalar_lea.vmem [#allocation4], %s556
          %558 = dma.done %s555, 16
        $region60: #{tpu_custom_call.1} parent=51 // pred_fallthru
          _
        // Predicated region
        $region61: #{tpu_custom_call.1} parent=51 // pred_check
          %p559 = pneg %p202
        $region62: #{tpu_custom_call.1} parent=51 // pred_check_branch
          %561 = sbr.rel (%p559) target = $region64
        $region63: #{tpu_custom_call.1} parent=51 // pred_region
          %s562 = sand.u32 %s24, 1
          %s563 = scalar_lea.sflag [#allocation5], %s562
          %s564 = sand.u32 %s187, 1
          %s565 = scalar_lea.vmem [#allocation6], %s564
          %566 = dma.done %s563, 16
        $region64: #{tpu_custom_call.1} parent=51 // pred_fallthru
          _
      $region52: #{tpu_custom_call.1} parent=5 // pred_fallthru
        _
    $region6: #{tpu_custom_call.1} parent=1 // loop_footer
      %s22 = sadd.s32 1, %s18
    $region7: #{tpu_custom_call.1} parent=1 // loop_footer_branch
      %17 = sbr.rel target = $region3
    $region8: #{tpu_custom_call.1} parent=1 // loop_exit
      _
    %567 = vsyncpa [#allocation3], 1
    %s568 = scalar_lea.sflag [#allocation3], 1
    %569 = vsyncpa %s568, 1
    %570 = vsyncpa [#allocation5], 1
    %s571 = scalar_lea.sflag [#allocation5], 1
    %572 = vsyncpa %s571, 1

</llo_original>
